<compile_context>
chip_gen: v7x
topology: tpu7x:2x2x1
jax: 0.10.0
libtpu: 0.0.40
codegen_flags: <defaults>
</compile_context>

<pallas_src>
import functools

import jax
import jax.numpy as jnp
from jax.experimental import pallas as pl
from jax.experimental.pallas import tpu as pltpu


def _round_up(x: int, m: int) -> int:
    return (x + m - 1) // m * m


def _vmem_budget_bytes() -> int:
    """~75% of per-core VMEM, capped at 96 MiB (keeps v7x's 64 MiB safe)."""
    cap = None
    try:
        cap = getattr(pltpu.get_tpu_info(), "vmem_capacity_bytes", None)
    except Exception:
        cap = None
    if not cap:
        cap = 64 * 1024 * 1024            # conservative fallback, fits every gen
    return int(min(int(0.75 * cap), 96 * 1024 * 1024))


def _feature_projection_kernel(x_ref, gamma_ref, beta_ref, w_ref, bias_ref,
                               o_ref, xn_ref, *, eps: float, inv_n: float):
    # Grid = (row-tile index i, output-feature tile index j); j is the inner
    # ("arbitrary") axis, so the LayerNorm below runs before the matmuls.
    @pl.when(pl.program_id(1) == 0)
    def _():
        x = x_ref[...].astype(jnp.float32)                        # (tm, F_in)
        mean = jnp.sum(x, axis=-1, keepdims=True) * inv_n
        xc = x - mean
        var = jnp.sum(xc * xc, axis=-1, keepdims=True) * inv_n    # >= 0 (two-pass)
        xn = xc * jax.lax.rsqrt(var + eps) * gamma_ref[...] + beta_ref[...]
        xn_ref[...] = xn.astype(xn_ref.dtype)

    # (tm, F_in) @ (F_in, n_tile) on the MXU, f32 accumulation.
    y = jnp.dot(xn_ref[...], w_ref[...], preferred_element_type=jnp.float32)
    # Dropout(rate=0.0) == identity.
    o_ref[...] = (y + bias_ref[...]).astype(o_ref.dtype)


def feature_projection(x, gamma, beta, weight, bias, *, eps=1e-5,
                       row_tile=1024, n_tile=None, mxu_dtype=None,
                       dropout_rate=0.0):
    """x: [B, S, F_in]; weight: [F_in, F_out] (transposed from torch's
    [out, in]); gamma/beta: [F_in]; bias: [F_out].  Returns [B, S, F_out]."""
    if dropout_rate != 0.0:
        # TODO(synk): training-mode dropout via pltpu.prng_seed/prng_random_bits.
        raise NotImplementedError("only dropout_rate=0.0 (eval mode) is supported")

    B, S, F_in = x.shape
    F_out = weight.shape[1]
    rows = B * S
    if mxu_dtype is None:
        mxu_dtype = jnp.float32
    mxu_dtype = jnp.dtype(mxu_dtype)

    budget = _vmem_budget_bytes()

    # Layout-padded sizes used only for VMEM accounting (Mosaic pads the lane
    # dim to 128 and the sublane dim to 8 internally).
    f_in_lane = _round_up(F_in, 128)
    f_in_sub = _round_up(F_in, 8)
    bpe_x = jnp.dtype(x.dtype).itemsize
    bpe_w = mxu_dtype.itemsize

    # --- output-feature tile ------------------------------------------------
    def _weight_block_bytes(nt):
        return 2 * f_in_sub * _round_up(nt, 128) * bpe_w          # double-buffered

    if n_tile is None:
        n_tile = F_out
        if F_out % 128 == 0:
            for cand in (F_out, 2048, 1024, 512, 256, 128):
                if cand <= F_out and F_out % cand == 0 and \
                        (_weight_block_bytes(cand) <= budget // 3 or cand == 128):
                    n_tile = cand
                    break
    elif n_tile != F_out and n_tile % 128 != 0:
        raise ValueError("n_tile must equal F_out or be a multiple of 128")
    n_tile_lane = _round_up(n_tile, 128)

    # --- row tile -------------------------------------------------------------
    def _working_set_bytes(tm):
        xbuf = 2 * tm * f_in_lane * bpe_x                          # x double-buffer
        obuf = 2 * tm * n_tile_lane * bpe_x                        # out double-buffer
        wbuf = _weight_block_bytes(n_tile)
        pbuf = 2 * (2 * f_in_lane + n_tile_lane) * 4               # gamma/beta/bias
        xn_scr = tm * f_in_lane * bpe_w                            # xn scratch
        temps = 3 * tm * f_in_lane * 4 + tm * n_tile_lane * 4      # f32 LN/mm temps
        return xbuf + obuf + wbuf + pbuf + xn_scr + temps

    tile = max(8, min(int(row_tile), _round_up(rows, 8)))
    tile = _round_up(tile, 8)
    while tile > 8 and _working_set_bytes(tile) > budget:
        tile = max(8, _round_up(tile // 2, 8))

    # --- inputs: no padding copies (full-extent feature blocks, ragged rows) --
    x2 = x.reshape(rows, F_in)
    gamma2 = gamma.astype(jnp.float32).reshape(1, F_in)
    beta2 = beta.astype(jnp.float32).reshape(1, F_in)
    w2 = weight.astype(mxu_dtype)        # cast once in HBM (halves DMA for bf16)
    bias2 = bias.astype(jnp.float32).reshape(1, F_out)

    grid = (pl.cdiv(rows, tile), pl.cdiv(F_out, n_tile))

    out = pl.pallas_call(
        functools.partial(_feature_projection_kernel, eps=float(eps),
                          inv_n=1.0 / float(F_in)),
        out_shape=jax.ShapeDtypeStruct((rows, F_out), x.dtype),
        grid_spec=pltpu.PrefetchScalarGridSpec(
            num_scalar_prefetch=0,
            grid=grid,
            in_specs=[
                pl.BlockSpec((tile, F_in), lambda i, j: (i, 0)),     # x rows
                pl.BlockSpec((1, F_in), lambda i, j: (0, 0)),        # gamma
                pl.BlockSpec((1, F_in), lambda i, j: (0, 0)),        # beta
                pl.BlockSpec((F_in, n_tile), lambda i, j: (0, j)),   # weight tile
                pl.BlockSpec((1, n_tile), lambda i, j: (0, j)),      # bias tile
            ],
            out_specs=pl.BlockSpec((tile, n_tile), lambda i, j: (i, j)),
            scratch_shapes=[pltpu.VMEM((tile, F_in), mxu_dtype)],    # normalized x
        ),
        compiler_params=pltpu.CompilerParams(
            # Row axis shards across v7x's 2 TensorCores; the N axis must stay
            # sequential so the j==0 LayerNorm runs before its matmuls.
            dimension_semantics=("parallel", "arbitrary"),
            vmem_limit_bytes=budget),
    )(x2, gamma2, beta2, w2, bias2)

    return out.reshape(B, S, F_out)


def _reference(x, gamma, beta, weight, bias, eps=1e-5):
    x = x.astype(jnp.float32)
    mean = jnp.mean(x, axis=-1, keepdims=True)
    var = jnp.mean((x - mean) ** 2, axis=-1, keepdims=True)
    xn = (x - mean) * jax.lax.rsqrt(var + eps) * gamma + beta
    return xn @ weight + bias


if __name__ == "__main__":
    # Small shapes consistent with the module: [batch, seq, in_features].
    B, S, F_in, F_out = 2, 8, 32, 64

    key = jax.random.PRNGKey(0)
    kx, kg, kb, kw, kbias = jax.random.split(key, 5)

    x = jax.random.normal(kx, (B, S, F_in), dtype=jnp.float32)
    gamma = jnp.ones((F_in,), jnp.float32) + 0.01 * jax.random.normal(kg, (F_in,))
    beta = 0.01 * jax.random.normal(kb, (F_in,), dtype=jnp.float32)
    # torch Linear stores weight as [out, in]; the kernel consumes [in, out].
    weight = (jax.random.normal(kw, (F_in, F_out), dtype=jnp.float32)
              / jnp.sqrt(jnp.float32(F_in)))
    bias = 0.01 * jax.random.normal(kbias, (F_out,), dtype=jnp.float32)

    ref = _reference(x, gamma, beta, weight, bias)

    # f32 MXU path.  Tolerance allows for the MXU's default f32 matmul
    # strategy (bf16 passes on some generations) in either kernel or reference.
    out = jax.block_until_ready(feature_projection(x, gamma, beta, weight, bias))
    assert out.shape == (B, S, F_out)
    assert jnp.allclose(out, ref, atol=2e-2, rtol=1e-2), \
        float(jnp.max(jnp.abs(out - ref)))

    # Same path with a small row tile to exercise the multi-tile pipeline.
    out_small = jax.block_until_ready(
        feature_projection(x, gamma, beta, weight, bias, row_tile=8))
    assert jnp.allclose(out_small, ref, atol=2e-2, rtol=1e-2)

    # bf16-into-MXU perf path: f32 LayerNorm stats, bf16 weight/activation
    # operands DMA'd at half width, f32 accumulation; looser tolerance.
    out_bf16 = jax.block_until_ready(
        feature_projection(x, gamma, beta, weight, bias, mxu_dtype=jnp.bfloat16))
    assert out_bf16.shape == (B, S, F_out)
    assert jnp.allclose(out_bf16, ref, atol=2e-1, rtol=5e-2)

    print("KERNEL_OK")
</pallas_src>

<mosaic_0001>
module attributes {stable_mosaic.version = 11 : i64} {
  func.func @_feature_projection_kernel(%arg0: i32, %arg1: i32, %arg2: memref<16x32xf32, #tpu.memory_space<vmem>>, %arg3: memref<1x32xf32, #tpu.memory_space<vmem>>, %arg4: memref<1x32xf32, #tpu.memory_space<vmem>>, %arg5: memref<32x64xf32, #tpu.memory_space<vmem>>, %arg6: memref<1x64xf32, #tpu.memory_space<vmem>>, %arg7: memref<16x64xf32, #tpu.memory_space<vmem>>, %arg8: memref<16x32xf32, #tpu.memory_space<vmem>>) attributes {dimension_semantics = [#tpu.dimension_semantics<parallel>, #tpu.dimension_semantics<arbitrary>], iteration_bounds = array<i64: 1, 1>, scalar_prefetch = 0 : i64, scratch_operands = 1 : i64, tpu.core_type = #tpu.core_type<tc>, window_params = [{transform_indices = @transform_0, window_bounds = array<i64: 16, 32>}, {pipeline_mode = #tpu.pipeline_mode<synchronous>, transform_indices = @transform_1, window_bounds = array<i64: 1, 32>}, {pipeline_mode = #tpu.pipeline_mode<synchronous>, transform_indices = @transform_2, window_bounds = array<i64: 1, 32>}, {transform_indices = @transform_3, window_bounds = array<i64: 32, 64>}, {transform_indices = @transform_4, window_bounds = array<i64: 1, 64>}, {transform_indices = @transform_5, window_bounds = array<i64: 16, 64>}]} {
    %c0_i32 = arith.constant 0 : i32
    %0 = arith.cmpi eq, %arg1, %c0_i32 : i32
    %1 = arith.extui %0 : i1 to i32
    %c0_i32_0 = arith.constant 0 : i32
    %2 = arith.cmpi ne, %1, %c0_i32_0 : i32
    scf.if %2 {
      %c0_8 = arith.constant 0 : index
      %c0_9 = arith.constant 0 : index
      %10 = vector.load %arg2[%c0_8, %c0_9] : memref<16x32xf32, #tpu.memory_space<vmem>>, vector<16x32xf32>
      %cst_10 = arith.constant dense<0.000000e+00> : vector<16xf32>
      %11 = vector.multi_reduction <add>, %10, %cst_10 [1] : vector<16x32xf32> to vector<16xf32>
      %12 = vector.shape_cast %11 : vector<16xf32> to vector<16x1xf32>
      %cst_11 = arith.constant 3.125000e-02 : f32
      %13 = vector.broadcast %cst_11 : f32 to vector<16x1xf32>
      %14 = arith.mulf %12, %13 : vector<16x1xf32>
      %15 = vector.broadcast %14 : vector<16x1xf32> to vector<16x32xf32>
      %16 = arith.subf %10, %15 : vector<16x32xf32>
      %17 = arith.mulf %16, %16 : vector<16x32xf32>
      %cst_12 = arith.constant dense<0.000000e+00> : vector<16xf32>
      %18 = vector.multi_reduction <add>, %17, %cst_12 [1] : vector<16x32xf32> to vector<16xf32>
      %19 = vector.shape_cast %18 : vector<16xf32> to vector<16x1xf32>
      %cst_13 = arith.constant 3.125000e-02 : f32
      %20 = vector.broadcast %cst_13 : f32 to vector<16x1xf32>
      %21 = arith.mulf %19, %20 : vector<16x1xf32>
      %cst_14 = arith.constant 9.99999974E-6 : f32
      %22 = vector.broadcast %cst_14 : f32 to vector<16x1xf32>
      %23 = arith.addf %21, %22 : vector<16x1xf32>
      %24 = math.rsqrt %23 : vector<16x1xf32>
      %25 = vector.broadcast %24 : vector<16x1xf32> to vector<16x32xf32>
      %26 = arith.mulf %16, %25 : vector<16x32xf32>
      %c0_15 = arith.constant 0 : index
      %c0_16 = arith.constant 0 : index
      %27 = vector.load %arg3[%c0_15, %c0_16] : memref<1x32xf32, #tpu.memory_space<vmem>>, vector<1x32xf32>
      %28 = vector.broadcast %27 : vector<1x32xf32> to vector<16x32xf32>
      %29 = arith.mulf %26, %28 : vector<16x32xf32>
      %c0_17 = arith.constant 0 : index
      %c0_18 = arith.constant 0 : index
      %30 = vector.load %arg4[%c0_17, %c0_18] : memref<1x32xf32, #tpu.memory_space<vmem>>, vector<1x32xf32>
      %31 = vector.broadcast %30 : vector<1x32xf32> to vector<16x32xf32>
      %32 = arith.addf %29, %31 : vector<16x32xf32>
      %c0_19 = arith.constant 0 : index
      %c0_20 = arith.constant 0 : index
      %33 = vector.load %arg8[%c0_19, %c0_20] : memref<16x32xf32, #tpu.memory_space<vmem>>, vector<16x32xf32>
      tpu.vector_store %arg8[%c0_19, %c0_20], %32 {strides = array<i32>} : memref<16x32xf32, #tpu.memory_space<vmem>>, vector<16x32xf32>,
    } else {
    }
    %c0 = arith.constant 0 : index
    %c0_1 = arith.constant 0 : index
    %3 = vector.load %arg8[%c0, %c0_1] : memref<16x32xf32, #tpu.memory_space<vmem>>, vector<16x32xf32>
    %c0_2 = arith.constant 0 : index
    %c0_3 = arith.constant 0 : index
    %4 = vector.load %arg5[%c0_2, %c0_3] : memref<32x64xf32, #tpu.memory_space<vmem>>, vector<32x64xf32>
    %cst = arith.constant dense<0.000000e+00> : vector<16x64xf32>
    %5 = tpu.matmul %3, %4, %cst {dimension_numbers = #tpu.dot_dimension_numbers<[1], [0], [0], [1], [0, 0, 1, 1], [], []>} : vector<16x32xf32>, vector<32x64xf32>, vector<16x64xf32> -> vector<16x64xf32>
    %c0_4 = arith.constant 0 : index
    %c0_5 = arith.constant 0 : index
    %6 = vector.load %arg6[%c0_4, %c0_5] : memref<1x64xf32, #tpu.memory_space<vmem>>, vector<1x64xf32>
    %7 = vector.broadcast %6 : vector<1x64xf32> to vector<16x64xf32>
    %8 = arith.addf %5, %7 : vector<16x64xf32>
    %c0_6 = arith.constant 0 : index
    %c0_7 = arith.constant 0 : index
    %9 = vector.load %arg7[%c0_6, %c0_7] : memref<16x64xf32, #tpu.memory_space<vmem>>, vector<16x64xf32>
    tpu.vector_store %arg7[%c0_6, %c0_7], %8 {strides = array<i32>} : memref<16x64xf32, #tpu.memory_space<vmem>>, vector<16x64xf32>,
    return
  }
  func.func @transform_0(%arg0: i32, %arg1: i32) -> (i32, i32) {
    %c0_i32 = arith.constant 0 : i32
    %c0_i32_0 = arith.constant 0 : i32
    return %arg0, %c0_i32 : i32, i32
  }
  func.func @transform_1(%arg0: i32, %arg1: i32) -> (i32, i32) {
    %c0_i32 = arith.constant 0 : i32
    %c0_i32_0 = arith.constant 0 : i32
    %c0_i32_1 = arith.constant 0 : i32
    return %c0_i32, %c0_i32_0 : i32, i32
  }
  func.func @transform_2(%arg0: i32, %arg1: i32) -> (i32, i32) {
    %c0_i32 = arith.constant 0 : i32
    %c0_i32_0 = arith.constant 0 : i32
    %c0_i32_1 = arith.constant 0 : i32
    return %c0_i32, %c0_i32_0 : i32, i32
  }
  func.func @transform_3(%arg0: i32, %arg1: i32) -> (i32, i32) {
    %c0_i32 = arith.constant 0 : i32
    %c0_i32_0 = arith.constant 0 : i32
    return %c0_i32, %arg1 : i32, i32
  }
  func.func @transform_4(%arg0: i32, %arg1: i32) -> (i32, i32) {
    %c0_i32 = arith.constant 0 : i32
    %c0_i32_0 = arith.constant 0 : i32
    return %c0_i32, %arg1 : i32, i32
  }
  func.func @transform_5(%arg0: i32, %arg1: i32) -> (i32, i32) {
    %c0_i32 = arith.constant 0 : i32
    return %arg0, %arg1 : i32, i32
  }
}

</mosaic_0001>

<llo_original>
// kernel: tpu_custom_call.1
$region0: #{tpu_custom_call.1}
  #allocation0 [shape = 'u32[]', space=smem, size = 0x4, offset = 0x4, fixed_abs, tag = 'smem constant byte address 0x4 - core index']
  #allocation1 [shape = 'u32[144,128]{1,0:T(1,128)}', space=vmem, size = 0x12000, scoped, tag = 'internal scratch']
  #allocation2 [shape = 'f32[16,32]{1,0:T(8,128)}', space=vmem, size = 0x2000, scoped, tag = 'scratch operand']
  %s0 = inlined_call_operand.hbm [shape: f32[16,32], index: 0, kind: input, shape index: {}]
  %s1 = inlined_call_operand.vmem [shape: f32[1,32], index: 1, kind: input, shape index: {}]
  %s2 = inlined_call_operand.vmem [shape: f32[1,32], index: 2, kind: input, shape index: {}]
  %s3 = inlined_call_operand.hbm [shape: f32[32,64], index: 3, kind: input, shape index: {}]
  %s4 = inlined_call_operand.vmem [shape: f32[1,64], index: 4, kind: input, shape index: {}]
  %s5 = inlined_call_operand.hbm [shape: f32[16,64], index: 5, kind: output, shape index: {}]
  %s6 = sld [smem:[#allocation0]]
  $region42: #{tpu_custom_call.1} parent=0
    _
  %s8 = ssub.s32 1, %s6
  %s9 = scalar_select 0, %s8, %s6
  $region1: #{tpu_custom_call.1} parent=0
    #allocation3 [shape = 'u8[8192]{0}', space=vmem, size = 0x2000, scoped, tag = 'input window, operand 0, single buffered']
    #allocation4 [shape = 's32[1]{0}', space=sflag, size = 0x4, scoped, tag = 'scoped memory for tpu_custom_call.1']
    #allocation5 [shape = 's32[1]{0}', space=sflag, size = 0x4, scoped, tag = 'scoped memory for tpu_custom_call.1']
    #allocation6 [shape = 'u8[16384]{0}', space=vmem, size = 0x4000, scoped, tag = 'input window, operand 3, single buffered']
    #allocation7 [shape = 's32[1]{0}', space=sflag, size = 0x4, scoped, tag = 'scoped memory for tpu_custom_call.1']
    #allocation8 [shape = 'u8[8192]{0}', space=vmem, size = 0x2000, scoped, tag = 'output window, operand 0, single buffered']
    %10 = vsyncpa [#allocation4], 0
    %11 = vsyncpa [#allocation7], 0
    %12 = vsyncpa [#allocation5], 0
    // Predicated region
    $region2: #{tpu_custom_call.1} parent=1 // pred_check
      _
    $region3: #{tpu_custom_call.1} parent=1 // pred_check_branch
      %14 = sbr.rel (0) target = $region5
    $region4: #{tpu_custom_call.1} parent=1 // pred_region
      %s16 = ssub.s32 256, 256
      %17 = vsyncadd [#allocation4], %s16
      %s18 = sshll.u32 [#allocation3], 4
      %s19 = int_to_ptr.vmem [resolvable:$true] %s18
      %24 = dma.hbm_to_vmem [thread:$0]  %s0, 256, %s19, [#allocation4], 128, 128, 8
    $region5: #{tpu_custom_call.1} parent=1 // pred_fallthru
      _
    // Predicated region
    $region6: #{tpu_custom_call.1} parent=1 // pred_check
      _
    $region7: #{tpu_custom_call.1} parent=1 // pred_check_branch
      %26 = sbr.rel (0) target = $region9
    $region8: #{tpu_custom_call.1} parent=1 // pred_region
      _
    $region9: #{tpu_custom_call.1} parent=1 // pred_fallthru
      _
    // Predicated region
    $region10: #{tpu_custom_call.1} parent=1 // pred_check
      _
    $region11: #{tpu_custom_call.1} parent=1 // pred_check_branch
      %28 = sbr.rel (0) target = $region13
    $region12: #{tpu_custom_call.1} parent=1 // pred_region
      _
    $region13: #{tpu_custom_call.1} parent=1 // pred_fallthru
      _
    // Predicated region
    $region14: #{tpu_custom_call.1} parent=1 // pred_check
      _
    $region15: #{tpu_custom_call.1} parent=1 // pred_check_branch
      %30 = sbr.rel (0) target = $region17
    $region16: #{tpu_custom_call.1} parent=1 // pred_region
      %s32 = ssub.s32 512, 512
      %33 = vsyncadd [#allocation7], %s32
      %s34 = sshll.u32 [#allocation6], 4
      %s35 = int_to_ptr.vmem [resolvable:$true] %s34
      %40 = dma.hbm_to_vmem [thread:$0]  %s3, 512, %s35, [#allocation7], 128, 128, 8
    $region17: #{tpu_custom_call.1} parent=1 // pred_fallthru
      _
    // Predicated region
    $region18: #{tpu_custom_call.1} parent=1 // pred_check
      _
    $region19: #{tpu_custom_call.1} parent=1 // pred_check_branch
      %42 = sbr.rel (0) target = $region21
    $region20: #{tpu_custom_call.1} parent=1 // pred_region
      _
    $region21: #{tpu_custom_call.1} parent=1 // pred_fallthru
      _
    // Predicated region
    $region22: #{tpu_custom_call.1} parent=1 // pred_check
      _
    $region23: #{tpu_custom_call.1} parent=1 // pred_check_branch
      %44 = sbr.rel (0) target = $region25
    $region24: #{tpu_custom_call.1} parent=1 // pred_region
      %45 = dma.done [#allocation4], 256
    $region25: #{tpu_custom_call.1} parent=1 // pred_fallthru
      _
    // Predicated region
    $region26: #{tpu_custom_call.1} parent=1 // pred_check
      _
    $region27: #{tpu_custom_call.1} parent=1 // pred_check_branch
      %47 = sbr.rel (0) target = $region29
    $region28: #{tpu_custom_call.1} parent=1 // pred_region
      %48 = dma.done [#allocation7], 512
    $region29: #{tpu_custom_call.1} parent=1 // pred_fallthru
      _
    %p49 = scmp.eq.s32.totalorder 0, 0
    // Predicated region
    $region30: #{tpu_custom_call.1} parent=1 // pred_check
      %p50 = pneg %p49
    $region31: #{tpu_custom_call.1} parent=1 // pred_check_branch
      %52 = sbr.rel (%p50) target = $region33
    $region32: #{tpu_custom_call.1} parent=1 // pred_region
      %v53 = vld [vmem:[#allocation3] sm:$0xff]
      %v54 = vld [vmem:[#allocation3 + $0x8] sm:$0xff]
      %vm55 = vcmask 261120
      %v56 = vsel %vm55, %v53, 0.0
      %57 = vadd.xlane.f32.xlu0 %v56
      %v58 = vpop.xlane.xlu0 %57
      %v59 = vsel %vm55, %v54, 0.0
      %60 = vadd.xlane.f32.xlu0 %v59
      %v61 = vpop.xlane.xlu0 %60
      %v62 = vmul.f32 %v58, 0.03125
      %v63 = vmul.f32 %v61, 0.03125
      %v64 = vsub.f32 %v53, %v62
      %v65 = vsub.f32 %v54, %v63
      %v66 = vmul.f32 %v64, %v64
      %v67 = vmul.f32 %v65, %v65
      %v68 = vsel %vm55, %v66, 0.0
      %69 = vadd.xlane.f32.xlu0 %v68
      %v70 = vpop.xlane.xlu0 %69
      %v71 = vsel %vm55, %v67, 0.0
      %72 = vadd.xlane.f32.xlu0 %v71
      %v73 = vpop.xlane.xlu0 %72
      %v74 = vmul.f32 %v70, 0.03125
      %v75 = vmul.f32 %v73, 0.03125
      %v76 = vadd.f32 %v74, 1e-05
      %v77 = vadd.f32 %v75, 1e-05
      %v78 = vrsqrt.pop %v76
      %v79 = vrsqrt.pop %v77
      %v80 = vmul.f32 %v64, %v78
      %v81 = vmul.f32 %v65, %v79
      %v82 = vld [vmem:[%s1] sm:$0x1]
      %v84 = vlaneseq
      %v85 = vshrl.u32 %v84, 7
      %v86 = vsub.s32 0, %v85
      %v87 = vrot.slane %v82, %v86
      %v89 = vmul.f32 %v80, %v87
      %v90 = vmul.f32 %v81, %v87
      %v91 = vld [vmem:[%s2] sm:$0x1]
      %v93 = vlaneseq
      %v94 = vshrl.u32 %v93, 7
      %v95 = vsub.s32 0, %v94
      %v96 = vrot.slane %v91, %v95
      %v98 = vadd.f32 %v89, %v96
      %v99 = vadd.f32 %v90, %v96
      %100 = vst.msk [vmem:[#allocation2] sm:$0xff] %vm55, %v98
      %101 = vst.msk [vmem:[#allocation2 + $0x8] sm:$0xff] %vm55, %v99
    $region33: #{tpu_custom_call.1} parent=1 // pred_fallthru
      _
    %v102 = vld [vmem:[#allocation2] sm:$0xff]
    %v103 = vld [vmem:[#allocation2 + $0x8] sm:$0xff]
    %v104 = vld [vmem:[#allocation6] sm:$0xff]
    %v105 = vld [vmem:[#allocation6 + $0x8] sm:$0xff]
    %v106 = vld [vmem:[#allocation6 + $0x10] sm:$0xff]
    %v107 = vld [vmem:[#allocation6 + $0x18] sm:$0xff]
    %v108 = vld [vmem:[%s4] sm:$0x1]
    %v110 = vlaneseq
    %v111 = vshrl.u32 %v110, 7
    %v112 = vsub.s32 0, %v111
    %v113 = vrot.slane %v108, %v112
    %vm115 = vcmask 261120
    %v117 = vsel %vm115, %v102, 0
    %v120 = vsel %vm115, %v103, 0
    %122 = vmatprep.subr.mxu0 0.0
    %123 = vmatpush1.msra.mxu0 %v104
    %124 = vmatprep.subr.mxu0 0.0
    %125 = vmatpush1.msra.mxu0 %v105
    %126 = vmatprep.subr.mxu0 0.0
    %127 = vmatpush1.msra.mxu0 %v106
    %128 = vmatprep.subr.mxu0 0.0
    %129 = vmatpush1.msra.mxu0 %v107
    %130 = vmatprep.subr.mxu0 0.0
    %131 = vmatpush1.msra.mxu0 0.0
    %132 = vmatprep.subr.mxu0 0.0
    %133 = vmatpush1.msra.mxu0 0.0
    %134 = vmatprep.subr.mxu0 0.0
    %135 = vmatpush1.msra.mxu0 0.0
    %136 = vmatprep.subr.mxu0 0.0
    %137 = vmatpush1.msra.mxu0 0.0
    %138 = vmatprep.subr.mxu0 0.0
    %139 = vmatpush1.msra.mxu0 0.0
    %140 = vmatprep.subr.mxu0 0.0
    %141 = vmatpush1.msra.mxu0 0.0
    %142 = vmatprep.subr.mxu0 0.0
    %143 = vmatpush1.msra.mxu0 0.0
    %144 = vmatprep.subr.mxu0 0.0
    %145 = vmatpush1.msra.mxu0 0.0
    %146 = vmatprep.subr.mxu0 0.0
    %147 = vmatpush1.msra.mxu0 0.0
    %148 = vmatprep.subr.mxu0 0.0
    %149 = vmatpush1.msra.mxu0 0.0
    %150 = vmatprep.subr.mxu0 0.0
    %151 = vmatpush1.msra.mxu0 0.0
    %152 = vmatprep.subr.mxu0 0.0
    %153 = vmatpush1.msra.mxu0 0.0
    %154 = vmatprep.subr.mxu0 0.0
    %155 = vmatpush1.msra.mxu0 0.0
    %156 = vmatprep.subr.mxu0 0.0
    %157 = vmatpush1.msra.mxu0 0.0
    %158 = vmatprep.subr.mxu0 0.0
    %159 = vmatpush1.msra.mxu0 0.0
    %160 = vmatprep.subr.mxu0 0.0
    %161 = vmatpush1.msra.mxu0 0.0
    %162 = vmatprep.subr.mxu0 0.0
    %163 = vmatpush1.msra.mxu0 0.0
    %164 = vmatprep.subr.mxu0 0.0
    %165 = vmatpush1.msra.mxu0 0.0
    %166 = vmatprep.subr.mxu0 0.0
    %167 = vmatpush1.msra.mxu0 0.0
    %168 = vmatprep.subr.mxu0 0.0
    %169 = vmatpush1.msra.mxu0 0.0
    %170 = vmatprep.subr.mxu0 0.0
    %171 = vmatpush1.msra.mxu0 0.0
    %172 = vmatprep.subr.mxu0 0.0
    %173 = vmatpush1.msra.mxu0 0.0
    %174 = vmatprep.subr.mxu0 0.0
    %175 = vmatpush1.msra.mxu0 0.0
    %176 = vmatprep.subr.mxu0 0.0
    %177 = vmatpush1.msra.mxu0 0.0
    %178 = vmatprep.subr.mxu0 0.0
    %179 = vmatpush1.msra.mxu0 0.0
    %180 = vmatprep.subr.mxu0 0.0
    %181 = vmatpush1.msra.mxu0 0.0
    %182 = vmatprep.subr.mxu0 0.0
    %183 = vmatpush1.msra.mxu0 0.0
    %184 = vmatprep.subr.mxu0 0.0
    %185 = vmatpush1.msra.mxu0 0.0
    %186 = vmatprep.mubr.f32.mxu0 0.0
    %187 = vmatmul.mubr.f32.gmra.mrb[0].mxu0 %v117
    %v188 = vpop.f32.mrb[0].mxu0
    %v189 = vadd.f32 %v113, %v188
    %v190 = vpop.f32.mrb[0].mxu0
    %191 = vmatprep.mubr.f32.mxu0 0.0
    %192 = vmatmul.mubr.f32.gmra.mrb[0].mxu0 %v120
    %v193 = vpop.f32.mrb[0].mxu0
    %v194 = vadd.f32 %v113, %v193
    %v195 = vpop.f32.mrb[0].mxu0
    %196 = vdwg.mxu0
    %vm197 = vcmask 523264
    %198 = vst.msk [vmem:[#allocation8] sm:$0xff] %vm197, %v189
    %199 = vst.msk [vmem:[#allocation8 + $0x8] sm:$0xff] %vm197, %v194
    // Predicated region
    $region34: #{tpu_custom_call.1} parent=1 // pred_check
      _
    $region35: #{tpu_custom_call.1} parent=1 // pred_check_branch
      %201 = sbr.rel (0) target = $region37
    $region36: #{tpu_custom_call.1} parent=1 // pred_region
      %s203 = ssub.s32 256, 256
      %204 = vsyncadd [#allocation5], %s203
      %s205 = sshll.u32 [#allocation8], 4
      %s206 = int_to_ptr.vmem [resolvable:$true] %s205
      %211 = dma.vmem_to_hbm [thread:$0]  %s206, 256, %s5, [#allocation5], 128, 128, 8
    $region37: #{tpu_custom_call.1} parent=1 // pred_fallthru
      _
    // Predicated region
    $region38: #{tpu_custom_call.1} parent=1 // pred_check
      _
    $region39: #{tpu_custom_call.1} parent=1 // pred_check_branch
      %213 = sbr.rel (0) target = $region41
    $region40: #{tpu_custom_call.1} parent=1 // pred_region
      %214 = dma.done [#allocation5], 256
    $region41: #{tpu_custom_call.1} parent=1 // pred_fallthru
      _
    %215 = vsyncpa [#allocation4], 1
    %216 = vsyncpa [#allocation7], 1
    %217 = vsyncpa [#allocation5], 1

</llo_original>
